<compile_context>
chip_gen: v7x
topology: tpu7x:2x2x1
jax: 0.10.0
libtpu: 0.0.40
codegen_flags: <defaults>
</compile_context>

<pallas_src>
import jax
import jax.numpy as jnp
from jax.experimental import pallas as pl
from jax.experimental.pallas import tpu as pltpu

EPS = 1e-5


# ---------------------------------------------------------------------------
# Kernel
# ---------------------------------------------------------------------------
def resblock_kernel(x_ref, w1_ref, bgb_ref, w2_ref, b2_ref, out_ref, r_ref, xw_ref):
    p = pl.program_id(0)                      # output-column split (parallel)
    j = pl.program_id(1)                      # hidden-feature tile (reduction)

    @pl.when(j == 0)
    def _():
        xw_ref[...] = x_ref[...].astype(xw_ref.dtype)   # cast x once per p, not per step
        r_ref[...] = jnp.zeros_like(r_ref)              # accumulate directly in output block

    # Linear 1, hidden-feature column tile j: (B, TN) = x @ W1^T[:, j*TN:(j+1)*TN] + b1_tile
    h1 = jnp.dot(xw_ref[...], w1_ref[...],
                 preferred_element_type=jnp.float32) + bgb_ref[0:1, :]

    # BatchNorm1d (training-mode batch stats, biased variance) — exact: full batch resident.
    mean = jnp.mean(h1, axis=0, keepdims=True)          # (1, TN)
    c = h1 - mean                                        # centered, computed once
    var = jnp.mean(c * c, axis=0, keepdims=True)
    scale = jax.lax.rsqrt(var + EPS) * bgb_ref[1:2, :]   # fold inv_std * gamma
    a = jnp.maximum(c * scale + bgb_ref[2:3, :], 0.0)    # ReLU, f32

    # Linear 2 partial sum into the resident output block:
    #   r[:, p*Dc:(p+1)*Dc] += a @ W2^T[j*TN:(j+1)*TN, p*Dc:(p+1)*Dc]
    r_ref[...] += jnp.dot(a.astype(w2_ref.dtype), w2_ref[...],
                          preferred_element_type=jnp.float32)

    @pl.when(j == pl.num_programs(1) - 1)
    def _():
        r_ref[...] += b2_ref[...]
        dc = out_ref.shape[1]
        col = pl.multiple_of(p * dc, 128)
        out_ref[...] = x_ref[:, pl.ds(col, dc)] + r_ref[...]   # forward returns (x + r, r)


# ---------------------------------------------------------------------------
# Hardware-aware sizing helpers
# ---------------------------------------------------------------------------
def _num_tensorcores():
    """v7x exposes 2 TensorCores per chip; earlier generations have 1."""
    try:
        kind = jax.devices()[0].device_kind.lower()
    except Exception:
        return 1
    return 2 if "v7" in kind else 1


def _vmem_budget_bytes():
    """Explicit scoped-VMEM budget with headroom under physical capacity."""
    cap = 64 << 20                                   # conservative fallback (v7x physical)
    try:
        cap = int(pltpu.get_tpu_info().vmem_capacity_bytes)
    except Exception:
        pass
    return min(int(cap * 3 // 4), 96 << 20)          # ~48 MiB on v7x, ~96 MiB on v5e/v6e


def _pick_tn(dim, wbytes, vmem_budget, batch=8, max_tn=2048):
    """Largest TN (multiple of 128, dividing dim) whose double-buffered tiles fit the budget."""
    best = 128
    fixed = 3 * batch * dim * 4 + batch * dim * wbytes + 2 * 2 * dim * 4  # x/out/r + xw + b2
    for tn in range(128, min(max_tn, dim) + 1, 128):
        if dim % tn:
            continue
        streamed = 2 * (2 * dim * tn * wbytes + 3 * tn * 4)   # 2x buffered W1+W2+bgb tiles
        if fixed + streamed <= vmem_budget:
            best = tn
    return best


def _pick_col_splits(dim):
    nc = _num_tensorcores()
    if nc < 2 or dim % (nc * 128) != 0:
        return 1
    return nc


# ---------------------------------------------------------------------------
# Wrapper
# ---------------------------------------------------------------------------
def resblock_forward(x, params):
    """x: (B, D) float32. params: kernel-layout params from prepare_params()."""
    B, D = x.shape
    assert B % 8 == 0, "batch must be a multiple of 8 (sublane axis)"
    assert D % 128 == 0, "feature dim must be a multiple of 128 (lane axis)"

    tn = params["tn"]
    nc = params["n_col_splits"]
    dc = D // nc
    assert D % tn == 0 and tn % 128 == 0 and dc % 128 == 0

    w1_tb, w2_t = params["w1_t_blocked"], params["w2_t"]
    bgb, b2 = params["bgb"], params["b2"]
    wbytes = jnp.dtype(w1_tb.dtype).itemsize

    cost = pl.CostEstimate(
        flops=2 * B * D * D * (nc + 1),                 # Linear1 recomputed per column split
        transcendentals=nc * D,                         # rsqrt per hidden feature per split
        bytes_accessed=(nc + 1) * D * D * wbytes + 3 * B * D * 4 + 5 * D * 4,
    )

    out, r = pl.pallas_call(
        resblock_kernel,
        out_shape=(jax.ShapeDtypeStruct((B, D), jnp.float32),
                   jax.ShapeDtypeStruct((B, D), jnp.float32)),
        grid_spec=pltpu.PrefetchScalarGridSpec(
            num_scalar_prefetch=0,
            grid=(nc, D // tn),
            in_specs=[
                pl.BlockSpec((B, D), lambda p, j: (0, 0)),        # x (resident, f32)
                pl.BlockSpec((None, D, tn), lambda p, j: (j, 0, 0)),  # W1^T slab (contiguous)
                pl.BlockSpec((3, tn), lambda p, j: (0, j)),       # packed b1/gamma/beta tile
                pl.BlockSpec((tn, dc), lambda p, j: (j, p)),      # W2^T tile (rows j, cols p)
                pl.BlockSpec((1, dc), lambda p, j: (0, p)),       # b2 column slice
            ],
            out_specs=(pl.BlockSpec((B, dc), lambda p, j: (0, p)),    # out = x + r
                       pl.BlockSpec((B, dc), lambda p, j: (0, p))),   # r (also the accumulator)
            scratch_shapes=[pltpu.VMEM((B, D), w1_tb.dtype)],     # x cast to streaming dtype
        ),
        compiler_params=pltpu.CompilerParams(
            dimension_semantics=("parallel", "arbitrary"),        # col-split || reduction
            vmem_limit_bytes=params["vmem_limit_bytes"],
        ),
        cost_estimate=cost,
    )(x, w1_tb, bgb, w2_t, b2)
    return out, r


# ---------------------------------------------------------------------------
# Parameters
# ---------------------------------------------------------------------------
def init_params(key, dim):
    """PyTorch-convention parameters (nn.Linear default init, fresh BatchNorm1d)."""
    k1, k2, k3, k4 = jax.random.split(key, 4)
    bound = 1.0 / jnp.sqrt(dim)
    return {
        "w1": jax.random.uniform(k1, (dim, dim), jnp.float32, -bound, bound),
        "b1": jax.random.uniform(k2, (dim,), jnp.float32, -bound, bound),
        "gamma": jnp.ones((dim,), jnp.float32),
        "beta": jnp.zeros((dim,), jnp.float32),
        "w2": jax.random.uniform(k3, (dim, dim), jnp.float32, -bound, bound),
        "b2": jax.random.uniform(k4, (dim,), jnp.float32, -bound, bound),
    }


def prepare_params(params, weight_dtype=jnp.bfloat16, tn=None, n_col_splits=None):
    """One-time layout/dtype prep (never per forward call):
       - W1^T stored tile-blocked (D//TN, D, TN) so each grid step is one contiguous DMA slab,
       - W2^T transposed for a @ W2^T,
       - b1/gamma/beta packed into a single (3, D) array,
       - TN / column-split / VMEM limit chosen per TPU generation."""
    dim = int(params["w1"].shape[0])
    assert dim % 128 == 0, "feature dim must be a multiple of 128"
    wbytes = jnp.dtype(weight_dtype).itemsize
    budget = _vmem_budget_bytes()
    if tn is None:
        tn = _pick_tn(dim, wbytes, budget)
    assert dim % tn == 0 and tn % 128 == 0
    if n_col_splits is None:
        n_col_splits = _pick_col_splits(dim)
    assert dim % n_col_splits == 0 and (dim // n_col_splits) % 128 == 0

    w1_t = params["w1"].T.astype(weight_dtype)                       # (D, D), col j -> hidden j
    w1_t_blocked = w1_t.reshape(dim, dim // tn, tn).transpose(1, 0, 2)   # (D//TN, D, TN)
    bgb = jnp.stack([params["b1"], params["gamma"], params["beta"]]).astype(jnp.float32)

    return {
        "w1_t_blocked": w1_t_blocked,
        "w2_t": params["w2"].T.astype(weight_dtype),
        "bgb": bgb,                                                  # (3, D): b1, gamma, beta
        "b2": params["b2"].reshape(1, dim).astype(jnp.float32),
        "tn": tn,
        "n_col_splits": n_col_splits,
        "vmem_limit_bytes": budget,
    }


# ---------------------------------------------------------------------------
# Reference & test
# ---------------------------------------------------------------------------
def _reference(x, p):
    h1 = x @ p["w1"].T + p["b1"]
    mean = h1.mean(axis=0, keepdims=True)
    var = ((h1 - mean) ** 2).mean(axis=0, keepdims=True)
    hn = (h1 - mean) / jnp.sqrt(var + EPS) * p["gamma"] + p["beta"]
    a = jnp.maximum(hn, 0.0)
    r = a @ p["w2"].T + p["b2"]
    return x + r, r


if __name__ == "__main__":
    key = jax.random.PRNGKey(0)
    kx, kp = jax.random.split(key)

    B, DIM = 8, 256
    x = jax.random.normal(kx, (B, DIM), jnp.float32)
    params = init_params(kp, DIM)
    out_ref, r_ref = _reference(x, params)

    # Exact-math check (f32 weights), forced multi-step reduction grid, single column split.
    p32 = prepare_params(params, jnp.float32, tn=128, n_col_splits=1)
    out32, r32 = resblock_forward(x, p32)
    jax.block_until_ready((out32, r32))
    assert jnp.allclose(out32, out_ref, atol=1e-4, rtol=1e-4)
    assert jnp.allclose(r32, r_ref, atol=1e-4, rtol=1e-4)

    # Exact-math check of the 2-way output-column split path (v7x megacore layout).
    p32s = prepare_params(params, jnp.float32, tn=128, n_col_splits=2)
    out32s, r32s = resblock_forward(x, p32s)
    jax.block_until_ready((out32s, r32s))
    assert jnp.allclose(out32s, out_ref, atol=1e-4, rtol=1e-4)
    assert jnp.allclose(r32s, r_ref, atol=1e-4, rtol=1e-4)

    # Performance path: bf16 weight streaming, TN / column split / VMEM limit auto-sized.
    p16 = prepare_params(params, jnp.bfloat16)
    out16, r16 = resblock_forward(x, p16)
    jax.block_until_ready((out16, r16))
    assert jnp.allclose(out16, out_ref, atol=5e-2, rtol=5e-2)
    assert jnp.allclose(r16, r_ref, atol=5e-2, rtol=5e-2)

    print("KERNEL_OK")
</pallas_src>

<mosaic_0001>
module attributes {stable_mosaic.version = 11 : i64} {
  func.func @resblock_kernel(%arg0: i32, %arg1: i32, %arg2: memref<8x256xf32, #tpu.memory_space<vmem>>, %arg3: memref<1x256x128xf32, #tpu.memory_space<vmem>>, %arg4: memref<3x128xf32, #tpu.memory_space<vmem>>, %arg5: memref<128x256xf32, #tpu.memory_space<vmem>>, %arg6: memref<1x256xf32, #tpu.memory_space<vmem>>, %arg7: memref<8x256xf32, #tpu.memory_space<vmem>>, %arg8: memref<8x256xf32, #tpu.memory_space<vmem>>, %arg9: memref<8x256xf32, #tpu.memory_space<vmem>>) attributes {dimension_semantics = [#tpu.dimension_semantics<parallel>, #tpu.dimension_semantics<arbitrary>], iteration_bounds = array<i64: 1, 2>, scalar_prefetch = 0 : i64, scratch_operands = 1 : i64, tpu.core_type = #tpu.core_type<tc>, window_params = [{pipeline_mode = #tpu.pipeline_mode<synchronous>, transform_indices = @transform_0, window_bounds = array<i64: 8, 256>}, {transform_indices = @transform_1, window_bounds = array<i64: 1, 256, 128>}, {transform_indices = @transform_2, window_bounds = array<i64: 3, 128>}, {transform_indices = @transform_3, window_bounds = array<i64: 128, 256>}, {transform_indices = @transform_4, window_bounds = array<i64: 1, 256>}, {transform_indices = @transform_5, window_bounds = array<i64: 8, 256>}, {transform_indices = @transform_6, window_bounds = array<i64: 8, 256>}]} {
    %c0_i32 = arith.constant 0 : i32
    %0 = arith.cmpi eq, %arg1, %c0_i32 : i32
    %1 = arith.extui %0 : i1 to i32
    %c0_i32_0 = arith.constant 0 : i32
    %2 = arith.cmpi ne, %1, %c0_i32_0 : i32
    scf.if %2 {
      %c0_23 = arith.constant 0 : index
      %c0_24 = arith.constant 0 : index
      %41 = vector.load %arg2[%c0_23, %c0_24] : memref<8x256xf32, #tpu.memory_space<vmem>>, vector<8x256xf32>
      %c0_25 = arith.constant 0 : index
      %c0_26 = arith.constant 0 : index
      %42 = vector.load %arg9[%c0_25, %c0_26] : memref<8x256xf32, #tpu.memory_space<vmem>>, vector<8x256xf32>
      tpu.vector_store %arg9[%c0_25, %c0_26], %41 {strides = array<i32>} : memref<8x256xf32, #tpu.memory_space<vmem>>, vector<8x256xf32>,
      %cst_27 = arith.constant 0.000000e+00 : f32
      %43 = vector.broadcast %cst_27 : f32 to vector<8x256xf32>
      %c0_28 = arith.constant 0 : index
      %c0_29 = arith.constant 0 : index
      %44 = vector.load %arg8[%c0_28, %c0_29] : memref<8x256xf32, #tpu.memory_space<vmem>>, vector<8x256xf32>
      tpu.vector_store %arg8[%c0_28, %c0_29], %43 {strides = array<i32>} : memref<8x256xf32, #tpu.memory_space<vmem>>, vector<8x256xf32>,
    } else {
    }
    %c0 = arith.constant 0 : index
    %c0_1 = arith.constant 0 : index
    %3 = vector.load %arg9[%c0, %c0_1] : memref<8x256xf32, #tpu.memory_space<vmem>>, vector<8x256xf32>
    %c0_2 = arith.constant 0 : index
    %c0_3 = arith.constant 0 : index
    %c0_4 = arith.constant 0 : index
    %4 = vector.load %arg3[%c0_2, %c0_3, %c0_4] : memref<1x256x128xf32, #tpu.memory_space<vmem>>, vector<1x256x128xf32>
    %5 = vector.shape_cast %4 : vector<1x256x128xf32> to vector<256x128xf32>
    %cst = arith.constant dense<0.000000e+00> : vector<8x128xf32>
    %6 = tpu.matmul %3, %5, %cst {dimension_numbers = #tpu.dot_dimension_numbers<[1], [0], [0], [1], [0, 0, 1, 1], [], []>} : vector<8x256xf32>, vector<256x128xf32>, vector<8x128xf32> -> vector<8x128xf32>
    %c0_5 = arith.constant 0 : index
    %c0_6 = arith.constant 0 : index
    %7 = vector.load %arg4[%c0_5, %c0_6] : memref<3x128xf32, #tpu.memory_space<vmem>>, vector<1x128xf32>
    %8 = vector.broadcast %7 : vector<1x128xf32> to vector<8x128xf32>
    %9 = arith.addf %6, %8 : vector<8x128xf32>
    %cst_7 = arith.constant dense<0.000000e+00> : vector<128xf32>
    %10 = vector.multi_reduction <add>, %9, %cst_7 [0] : vector<8x128xf32> to vector<128xf32>
    %11 = vector.shape_cast %10 : vector<128xf32> to vector<1x128xf32>
    %cst_8 = arith.constant 8.000000e+00 : f32
    %12 = vector.broadcast %cst_8 : f32 to vector<1x128xf32>
    %13 = arith.divf %11, %12 : vector<1x128xf32>
    %14 = vector.broadcast %13 : vector<1x128xf32> to vector<8x128xf32>
    %15 = arith.subf %9, %14 : vector<8x128xf32>
    %16 = arith.mulf %15, %15 : vector<8x128xf32>
    %cst_9 = arith.constant dense<0.000000e+00> : vector<128xf32>
    %17 = vector.multi_reduction <add>, %16, %cst_9 [0] : vector<8x128xf32> to vector<128xf32>
    %18 = vector.shape_cast %17 : vector<128xf32> to vector<1x128xf32>
    %cst_10 = arith.constant 8.000000e+00 : f32
    %19 = vector.broadcast %cst_10 : f32 to vector<1x128xf32>
    %20 = arith.divf %18, %19 : vector<1x128xf32>
    %cst_11 = arith.constant 9.99999974E-6 : f32
    %21 = vector.broadcast %cst_11 : f32 to vector<1x128xf32>
    %22 = arith.addf %20, %21 : vector<1x128xf32>
    %23 = math.rsqrt %22 : vector<1x128xf32>
    %c1 = arith.constant 1 : index
    %c0_12 = arith.constant 0 : index
    %24 = vector.load %arg4[%c1, %c0_12] : memref<3x128xf32, #tpu.memory_space<vmem>>, vector<1x128xf32>
    %25 = arith.mulf %23, %24 : vector<1x128xf32>
    %26 = vector.broadcast %25 : vector<1x128xf32> to vector<8x128xf32>
    %27 = arith.mulf %15, %26 : vector<8x128xf32>
    %c2 = arith.constant 2 : index
    %c0_13 = arith.constant 0 : index
    %28 = vector.load %arg4[%c2, %c0_13] : memref<3x128xf32, #tpu.memory_space<vmem>>, vector<1x128xf32>
    %29 = vector.broadcast %28 : vector<1x128xf32> to vector<8x128xf32>
    %30 = arith.addf %27, %29 : vector<8x128xf32>
    %cst_14 = arith.constant 0.000000e+00 : f32
    %31 = vector.broadcast %cst_14 : f32 to vector<8x128xf32>
    %32 = arith.maximumf %30, %31 : vector<8x128xf32>
    %c0_15 = arith.constant 0 : index
    %c0_16 = arith.constant 0 : index
    %33 = vector.load %arg8[%c0_15, %c0_16] : memref<8x256xf32, #tpu.memory_space<vmem>>, vector<8x256xf32>
    %c0_17 = arith.constant 0 : index
    %c0_18 = arith.constant 0 : index
    %34 = vector.load %arg5[%c0_17, %c0_18] : memref<128x256xf32, #tpu.memory_space<vmem>>, vector<128x256xf32>
    %cst_19 = arith.constant dense<0.000000e+00> : vector<8x256xf32>
    %35 = tpu.matmul %32, %34, %cst_19 {dimension_numbers = #tpu.dot_dimension_numbers<[1], [0], [0], [1], [0, 0, 1, 1], [], []>} : vector<8x128xf32>, vector<128x256xf32>, vector<8x256xf32> -> vector<8x256xf32>
    %36 = arith.addf %33, %35 : vector<8x256xf32>
    %c0_20 = arith.constant 0 : index
    %c0_21 = arith.constant 0 : index
    %37 = vector.load %arg8[%c0_20, %c0_21] : memref<8x256xf32, #tpu.memory_space<vmem>>, vector<8x256xf32>
    tpu.vector_store %arg8[%c0_20, %c0_21], %36 {strides = array<i32>} : memref<8x256xf32, #tpu.memory_space<vmem>>, vector<8x256xf32>,
    %c1_i32 = arith.constant 1 : i32
    %38 = arith.cmpi eq, %arg1, %c1_i32 : i32
    %39 = arith.extui %38 : i1 to i32
    %c0_i32_22 = arith.constant 0 : i32
    %40 = arith.cmpi ne, %39, %c0_i32_22 : i32
    scf.if %40 {
      %c0_23 = arith.constant 0 : index
      %c0_24 = arith.constant 0 : index
      %41 = vector.load %arg8[%c0_23, %c0_24] : memref<8x256xf32, #tpu.memory_space<vmem>>, vector<8x256xf32>
      %c0_25 = arith.constant 0 : index
      %c0_26 = arith.constant 0 : index
      %42 = vector.load %arg6[%c0_25, %c0_26] : memref<1x256xf32, #tpu.memory_space<vmem>>, vector<1x256xf32>
      %43 = vector.broadcast %42 : vector<1x256xf32> to vector<8x256xf32>
      %44 = arith.addf %41, %43 : vector<8x256xf32>
      %c0_27 = arith.constant 0 : index
      %c0_28 = arith.constant 0 : index
      %45 = vector.load %arg8[%c0_27, %c0_28] : memref<8x256xf32, #tpu.memory_space<vmem>>, vector<8x256xf32>
      tpu.vector_store %arg8[%c0_27, %c0_28], %44 {strides = array<i32>} : memref<8x256xf32, #tpu.memory_space<vmem>>, vector<8x256xf32>,
      %c256_i32 = arith.constant 256 : i32
      %46 = arith.muli %arg0, %c256_i32 : i32
      %47 = tpu.assume_multiple %46, 128 : i32
      %c0_29 = arith.constant 0 : index
      %48 = arith.index_cast %47 : i32 to index
      %49 = vector.load %arg2[%c0_29, %48] : memref<8x256xf32, #tpu.memory_space<vmem>>, vector<8x256xf32>
      %c0_30 = arith.constant 0 : index
      %c0_31 = arith.constant 0 : index
      %50 = vector.load %arg8[%c0_30, %c0_31] : memref<8x256xf32, #tpu.memory_space<vmem>>, vector<8x256xf32>
      %51 = arith.addf %49, %50 : vector<8x256xf32>
      %c0_32 = arith.constant 0 : index
      %c0_33 = arith.constant 0 : index
      %52 = vector.load %arg7[%c0_32, %c0_33] : memref<8x256xf32, #tpu.memory_space<vmem>>, vector<8x256xf32>
      tpu.vector_store %arg7[%c0_32, %c0_33], %51 {strides = array<i32>} : memref<8x256xf32, #tpu.memory_space<vmem>>, vector<8x256xf32>,
    } else {
    }
    return
  }
  func.func @transform_0(%arg0: i32, %arg1: i32) -> (i32, i32) {
    %c0_i32 = arith.constant 0 : i32
    %c0_i32_0 = arith.constant 0 : i32
    %c0_i32_1 = arith.constant 0 : i32
    return %c0_i32, %c0_i32_0 : i32, i32
  }
  func.func @transform_1(%arg0: i32, %arg1: i32) -> (i32, i32, i32) {
    %c0_i32 = arith.constant 0 : i32
    %c0_i32_0 = arith.constant 0 : i32
    %c0_i32_1 = arith.constant 0 : i32
    return %arg1, %c0_i32, %c0_i32_0 : i32, i32, i32
  }
  func.func @transform_2(%arg0: i32, %arg1: i32) -> (i32, i32) {
    %c0_i32 = arith.constant 0 : i32
    %c0_i32_0 = arith.constant 0 : i32
    return %c0_i32, %arg1 : i32, i32
  }
  func.func @transform_3(%arg0: i32, %arg1: i32) -> (i32, i32) {
    %c0_i32 = arith.constant 0 : i32
    return %arg1, %arg0 : i32, i32
  }
  func.func @transform_4(%arg0: i32, %arg1: i32) -> (i32, i32) {
    %c0_i32 = arith.constant 0 : i32
    %c0_i32_0 = arith.constant 0 : i32
    return %c0_i32, %arg0 : i32, i32
  }
  func.func @transform_5(%arg0: i32, %arg1: i32) -> (i32, i32) {
    %c0_i32 = arith.constant 0 : i32
    %c0_i32_0 = arith.constant 0 : i32
    return %c0_i32, %arg0 : i32, i32
  }
  func.func @transform_6(%arg0: i32, %arg1: i32) -> (i32, i32) {
    %c0_i32 = arith.constant 0 : i32
    %c0_i32_0 = arith.constant 0 : i32
    return %c0_i32, %arg0 : i32, i32
  }
}

</mosaic_0001>

<llo_original>
// kernel: tpu_custom_call.1
$region0: #{tpu_custom_call.1}
  #allocation0 [shape = 'u32[]', space=smem, size = 0x4, offset = 0x4, fixed_abs, tag = 'smem constant byte address 0x4 - core index']
  #allocation1 [shape = 'u32[144,128]{1,0:T(1,128)}', space=vmem, size = 0x12000, scoped, tag = 'internal scratch']
  #allocation2 [shape = 'f32[8,256]{1,0:T(8,128)}', space=vmem, size = 0x2000, scoped, tag = 'scratch operand']
  %s0 = inlined_call_operand.hbm [shape: f32[8,256], index: 0, kind: input, shape index: {}]
  %s1 = inlined_call_operand.hbm [shape: f32[2,256,128], index: 1, kind: input, shape index: {}]
  %s2 = inlined_call_operand.hbm [shape: f32[3,256], index: 2, kind: input, shape index: {}]
  %s3 = inlined_call_operand.hbm [shape: f32[256,256], index: 3, kind: input, shape index: {}]
  %s4 = inlined_call_operand.vmem [shape: f32[1,256], index: 4, kind: input, shape index: {}]
  %s5 = inlined_call_operand.hbm [shape: f32[8,256], index: 5, kind: output, shape index: {0}]
  %s6 = inlined_call_operand.hbm [shape: f32[8,256], index: 6, kind: output, shape index: {1}]
  %7 = xla_tuple %s5, %s6
  %s8 = sld [smem:[#allocation0]]
  $region85: #{tpu_custom_call.1} parent=0
    _
  %s10 = ssub.s32 1, %s8
  %s11 = scalar_select 0, %s10, %s8
  $region1: #{tpu_custom_call.1} parent=0
    #allocation3 [shape = 'u8[8192]{0}', space=vmem, size = 0x2000, scoped, tag = 'input window, operand 0, single buffered']
    #allocation4 [shape = 's32[2]{0}', space=sflag, size = 0x8, scoped, tag = 'scoped memory for tpu_custom_call.1']
    #allocation5 [shape = 's32[2]{0}', space=sflag, size = 0x8, scoped, tag = 'scoped memory for tpu_custom_call.1']
    #allocation6 [shape = 'u8[262144]{0}', space=vmem, size = 0x40000, scoped, tag = 'input window, operand 1']
    #allocation7 [shape = 's32[2]{0}', space=sflag, size = 0x8, scoped, tag = 'scoped memory for tpu_custom_call.1']
    #allocation8 [shape = 'u8[4096]{0}', space=vmem, size = 0x1000, scoped, tag = 'input window, operand 2']
    #allocation9 [shape = 'u8[262144]{0}', space=vmem, size = 0x40000, scoped, tag = 'input window, operand 3']
    #allocation10 [shape = 's32[2]{0}', space=sflag, size = 0x8, scoped, tag = 'scoped memory for tpu_custom_call.1']
    #allocation11 [shape = 'u8[8192]{0}', space=vmem, size = 0x2000, scoped, tag = 'output window, operand 0, single buffered']
    #allocation12 [shape = 'u8[8192]{0}', space=vmem, size = 0x2000, scoped, tag = 'output window, operand 1, single buffered']
    #allocation13 [shape = 's32[1]{0}', space=sflag, size = 0x4, scoped, tag = 'scoped memory for tpu_custom_call.1']
    %12 = vsyncpa [#allocation4], 0
    %13 = vsyncpa [#allocation7], 0
    %s14 = scalar_lea.sflag [#allocation7], 1
    %15 = vsyncpa %s14, 0
    %16 = vsyncpa [#allocation10], 0
    %s17 = scalar_lea.sflag [#allocation10], 1
    %18 = vsyncpa %s17, 0
    %19 = vsyncpa [#allocation5], 0
    %20 = vsyncpa [#allocation13], 0
    loop: start=0, step=1, limit=4
    $region2: #{tpu_custom_call.1} parent=1 // loop_pre_header
      _
    $region3: #{tpu_custom_call.1} parent=1 // loop_header
      %s22 = sphi 0, %s26
      %p23 = scmp.ge.s32.totalorder %s22, 4
      %s29 = sphi 0, %s41
      %s30 = sphi 0, %s37
      %s31 = sphi 0, %s29
      %s32 = sphi 0, %s30
      %s33 = sphi 0, %s31
      %s34 = sphi 0, %s32
      %s42 = sphi 0, %s42
      %s44 = sphi 0, %s42
      %s45 = sphi 0, %s44
      %s59 = sphi 0, %s45
      %s65 = sphi 0, %s67
      %s68 = sphi 0, %s65
      %s69 = sphi 0, %s68
      %s85 = sphi 0, %s69
      %s91 = sphi 0, %s93
      %s94 = sphi 0, %s91
      %s95 = sphi 0, %s94
      %s111 = sphi 0, %s95
      %s119 = sphi 0, %s121
      %s122 = sphi 0, %s119
      %s123 = sphi 0, %s122
      %s139 = sphi 0, %s123
      %s145 = sphi 0, %s147
      %s148 = sphi 0, %s145
      %s149 = sphi 0, %s148
      %s165 = sphi 0, %s149
      %s171 = sphi 0, %s173
      %s174 = sphi 0, %s171
      %s175 = sphi 0, %s174
      %s191 = sphi 0, %s175
      %s197 = sphi 0, %s199
      %s200 = sphi 0, %s197
      %s201 = sphi 0, %s200
      %s217 = sphi 0, %s201
    $region4: #{tpu_custom_call.1} parent=1 // loop_header_branch
      %25 = sbr.rel (%p23) target = $region8
    $region5: #{tpu_custom_call.1} parent=1 // loop_body
      %s27 = ssub.s32 %s22, 1
      %s28 = ssub.s32 %s22, 2
      %s35 = sadd.s32 1, %s30
      %p36 = scmp.ge.s32.totalorder %s35, 2
      %s37 = scalar_select %p36, 0, %s35
      %s38 = sadd.s32 1, %s29
      %s39 = scalar_select %p36, %s38, %s29
      %p40 = scmp.ge.s32.totalorder %s39, 1
      %s41 = scalar_select %p40, 0, %s39
      %s43 = sadd.s32 %s42, 1
      %p46 = scmp.eq.s32.totalorder %s22, 1
      %p47 = scmp.ne.s32.totalorder %s42, %s44
      %p48 = scmp.eq.s32.totalorder %s22, 0
      %p49 = por %p47, %p48
      %p50 = scmp.ne.s32.totalorder %s42, %s44
      %p51 = scmp.eq.s32.totalorder %s27, 1
      %p52 = por %p50, %p51
      %p53 = scmp.ne.s32.totalorder %s44, %s45
      %p54 = scmp.eq.s32.totalorder %s27, 0
      %p55 = por %p53, %p54
      %p56 = scmp.ne.s32.totalorder %s44, %s45
      %p57 = scmp.eq.s32.totalorder %s28, 1
      %p58 = por %p56, %p57
      %p60 = scmp.ne.s32.totalorder %s45, %s59
      %p61 = scmp.eq.s32.totalorder %s28, 0
      %p62 = por %p60, %p61
      %s63 = ssub.s32 %s30, %s37
      %p64 = scmp.eq.s32.totalorder %s63, 0
      %s66 = sadd.s32 %s65, 1
      %s67 = scalar_select %p64, %s65, %s66
      %p70 = pneg %p64
      %p71 = scmp.eq.s32.totalorder %s22, 1
      %p72 = por %p70, %p71
      %p73 = scmp.ne.s32.totalorder %s65, %s68
      %p74 = scmp.eq.s32.totalorder %s22, 0
      %p75 = por %p73, %p74
      %p76 = scmp.ne.s32.totalorder %s65, %s68
      %p77 = scmp.eq.s32.totalorder %s27, 1
      %p78 = por %p76, %p77
      %p79 = scmp.ne.s32.totalorder %s68, %s69
      %p80 = scmp.eq.s32.totalorder %s27, 0
      %p81 = por %p79, %p80
      %p82 = scmp.ne.s32.totalorder %s68, %s69
      %p83 = scmp.eq.s32.totalorder %s28, 1
      %p84 = por %p82, %p83
      %p86 = scmp.ne.s32.totalorder %s69, %s85
      %p87 = scmp.eq.s32.totalorder %s28, 0
      %p88 = por %p86, %p87
      %s89 = ssub.s32 %s30, %s37
      %p90 = scmp.eq.s32.totalorder %s89, 0
      %s92 = sadd.s32 %s91, 1
      %s93 = scalar_select %p90, %s91, %s92
      %p96 = pneg %p90
      %p97 = scmp.eq.s32.totalorder %s22, 1
      %p98 = por %p96, %p97
      %p99 = scmp.ne.s32.totalorder %s91, %s94
      %p100 = scmp.eq.s32.totalorder %s22, 0
      %p101 = por %p99, %p100
      %p102 = scmp.ne.s32.totalorder %s91, %s94
      %p103 = scmp.eq.s32.totalorder %s27, 1
      %p104 = por %p102, %p103
      %p105 = scmp.ne.s32.totalorder %s94, %s95
      %p106 = scmp.eq.s32.totalorder %s27, 0
      %p107 = por %p105, %p106
      %p108 = scmp.ne.s32.totalorder %s94, %s95
      %p109 = scmp.eq.s32.totalorder %s28, 1
      %p110 = por %p108, %p109
      %p112 = scmp.ne.s32.totalorder %s95, %s111
      %p113 = scmp.eq.s32.totalorder %s28, 0
      %p114 = por %p112, %p113
      %s115 = ssub.s32 %s30, %s37
      %s116 = ssub.s32 %s29, %s41
      %s117 = sor.u32 %s115, %s116
      %p118 = scmp.eq.s32.totalorder %s117, 0
      %s120 = sadd.s32 %s119, 1
      %s121 = scalar_select %p118, %s119, %s120
      %p124 = pneg %p118
      %p125 = scmp.eq.s32.totalorder %s22, 1
      %p126 = por %p124, %p125
      %p127 = scmp.ne.s32.totalorder %s119, %s122
      %p128 = scmp.eq.s32.totalorder %s22, 0
      %p129 = por %p127, %p128
      %p130 = scmp.ne.s32.totalorder %s119, %s122
      %p131 = scmp.eq.s32.totalorder %s27, 1
      %p132 = por %p130, %p131
      %p133 = scmp.ne.s32.totalorder %s122, %s123
      %p134 = scmp.eq.s32.totalorder %s27, 0
      %p135 = por %p133, %p134
      %p136 = scmp.ne.s32.totalorder %s122, %s123
      %p137 = scmp.eq.s32.totalorder %s28, 1
      %p138 = por %p136, %p137
      %p140 = scmp.ne.s32.totalorder %s123, %s139
      %p141 = scmp.eq.s32.totalorder %s28, 0
      %p142 = por %p140, %p141
      %s143 = ssub.s32 %s29, %s41
      %p144 = scmp.eq.s32.totalorder %s143, 0
      %s146 = sadd.s32 %s145, 1
      %s147 = scalar_select %p144, %s145, %s146
      %p150 = pneg %p144
      %p151 = scmp.eq.s32.totalorder %s22, 1
      %p152 = por %p150, %p151
      %p153 = scmp.ne.s32.totalorder %s145, %s148
      %p154 = scmp.eq.s32.totalorder %s22, 0
      %p155 = por %p153, %p154
      %p156 = scmp.ne.s32.totalorder %s145, %s148
      %p157 = scmp.eq.s32.totalorder %s27, 1
      %p158 = por %p156, %p157
      %p159 = scmp.ne.s32.totalorder %s148, %s149
      %p160 = scmp.eq.s32.totalorder %s27, 0
      %p161 = por %p159, %p160
      %p162 = scmp.ne.s32.totalorder %s148, %s149
      %p163 = scmp.eq.s32.totalorder %s28, 1
      %p164 = por %p162, %p163
      %p166 = scmp.ne.s32.totalorder %s149, %s165
      %p167 = scmp.eq.s32.totalorder %s28, 0
      %p168 = por %p166, %p167
      %s169 = ssub.s32 %s29, %s41
      %p170 = scmp.eq.s32.totalorder %s169, 0
      %s172 = sadd.s32 %s171, 1
      %s173 = scalar_select %p170, %s171, %s172
      %p176 = pneg %p170
      %p177 = scmp.eq.s32.totalorder %s22, 1
      %p178 = por %p176, %p177
      %p179 = scmp.ne.s32.totalorder %s171, %s174
      %p180 = scmp.eq.s32.totalorder %s22, 0
      %p181 = por %p179, %p180
      %p182 = scmp.ne.s32.totalorder %s171, %s174
      %p183 = scmp.eq.s32.totalorder %s27, 1
      %p184 = por %p182, %p183
      %p185 = scmp.ne.s32.totalorder %s174, %s175
      %p186 = scmp.eq.s32.totalorder %s27, 0
      %p187 = por %p185, %p186
      %p188 = scmp.ne.s32.totalorder %s174, %s175
      %p189 = scmp.eq.s32.totalorder %s28, 1
      %p190 = por %p188, %p189
      %p192 = scmp.ne.s32.totalorder %s175, %s191
      %p193 = scmp.eq.s32.totalorder %s28, 0
      %p194 = por %p192, %p193
      %s195 = ssub.s32 %s29, %s41
      %p196 = scmp.eq.s32.totalorder %s195, 0
      %s198 = sadd.s32 %s197, 1
      %s199 = scalar_select %p196, %s197, %s198
      %p202 = pneg %p196
      %p203 = scmp.eq.s32.totalorder %s22, 1
      %p204 = por %p202, %p203
      %p205 = scmp.ne.s32.totalorder %s197, %s200
      %p206 = scmp.eq.s32.totalorder %s22, 0
      %p207 = por %p205, %p206
      %p208 = scmp.ne.s32.totalorder %s197, %s200
      %p209 = scmp.eq.s32.totalorder %s27, 1
      %p210 = por %p208, %p209
      %p211 = scmp.ne.s32.totalorder %s200, %s201
      %p212 = scmp.eq.s32.totalorder %s27, 0
      %p213 = por %p211, %p212
      %p214 = scmp.ne.s32.totalorder %s200, %s201
      %p215 = scmp.eq.s32.totalorder %s28, 1
      %p216 = por %p214, %p215
      %p218 = scmp.ne.s32.totalorder %s201, %s217
      %p219 = scmp.eq.s32.totalorder %s28, 0
      %p220 = por %p218, %p219
      %p221 = scmp.le.s32.totalorder 1, %s22
      %p222 = scmp.lt.s32.totalorder %s22, 3
      %p223 = pnand %p221, %p222
      %p224 = pneg %p223
      // Predicated region
      $region9: #{tpu_custom_call.1} parent=5 // pred_check
        _
      $region10: #{tpu_custom_call.1} parent=5 // pred_check_branch
        %226 = sbr.rel (%p223) target = $region12
      $region11: #{tpu_custom_call.1} parent=5 // pred_region
        %s227 = ssub.s32 %s22, 1
        // Predicated region
        $region13: #{tpu_custom_call.1} parent=11 // pred_check
          %p228 = pneg %p55
        $region14: #{tpu_custom_call.1} parent=11 // pred_check_branch
          %230 = sbr.rel (%p228) target = $region16
        $region15: #{tpu_custom_call.1} parent=11 // pred_region
          %s232 = ssub.s32 256, 256
          %233 = vsyncadd [#allocation4], %s232
          %s235 = sshll.u32 [#allocation3], 4
          %s236 = int_to_ptr.vmem [resolvable:$true] %s235
          %238 = dma.hbm_to_vmem [thread:$0]  %s0, 256, %s236, [#allocation4]
        $region16: #{tpu_custom_call.1} parent=11 // pred_fallthru
          _
        // Predicated region
        $region17: #{tpu_custom_call.1} parent=11 // pred_check
          %p239 = pneg %p161
        $region18: #{tpu_custom_call.1} parent=11 // pred_check_branch
          %241 = sbr.rel (%p239) target = $region20
        $region19: #{tpu_custom_call.1} parent=11 // pred_region
          %s242 = smul.u32 2, %s31
          %p243 = scmp.lt.s32.totalorder %s242, 1
          %s244 = scalar_select %p243, %s242, 1
          %s245 = scalar_lea.vmem %s4, %s244
          %s246 = smul.u32 2, %s31
        $region20: #{tpu_custom_call.1} parent=11 // pred_fallthru
          _
      $region12: #{tpu_custom_call.1} parent=5 // pred_fallthru
        _
      %p247 = scmp.lt.s32.totalorder %s22, 2
      // Predicated region
      $region21: #{tpu_custom_call.1} parent=5 // pred_check
        %p248 = pneg %p247
      $region22: #{tpu_custom_call.1} parent=5 // pred_check_branch
        %250 = sbr.rel (%p248) target = $region24
      $region23: #{tpu_custom_call.1} parent=5 // pred_region
        // Predicated region
        $region25: #{tpu_custom_call.1} parent=23 // pred_check
          %p251 = pneg %p75
        $region26: #{tpu_custom_call.1} parent=23 // pred_check_branch
          %253 = sbr.rel (%p251) target = $region28
        $region27: #{tpu_custom_call.1} parent=23 // pred_region
          %s254 = sand.u32 %s22, 1
          %s255 = scalar_lea.sflag [#allocation7], %s254
          %s256 = sand.u32 %s65, 1
          %s257 = smul.addr %s256, 256
          %s258 = scalar_lea.vmem [#allocation6], %s257
          %s260 = ssub.s32 4096, 4096
          %261 = vsyncadd %s255, %s260
          %s262 = smul.addr %s30, 32
          %s263 = smul.addr %s262, 128
          %s264 = scalar_lea.hbm %s1, %s263
          %s265 = sshll.u32 %s258, 4
          %s266 = int_to_ptr.vmem [resolvable:$true] %s265
          %271 = dma.hbm_to_vmem [thread:$0]  %s264, 4096, %s266, %s255, 128, 128, 8
        $region28: #{tpu_custom_call.1} parent=23 // pred_fallthru
          _
        // Predicated region
        $region29: #{tpu_custom_call.1} parent=23 // pred_check
          %p272 = pneg %p101
        $region30: #{tpu_custom_call.1} parent=23 // pred_check_branch
          %274 = sbr.rel (%p272) target = $region32
        $region31: #{tpu_custom_call.1} parent=23 // pred_region
          %s275 = sand.u32 %s22, 1
          %s276 = scalar_lea.sflag [#allocation7], %s275
          %s277 = sand.u32 %s91, 1
          %s278 = smul.addr %s277, 4
          %s279 = scalar_lea.vmem [#allocation8], %s278
          %s281 = ssub.s32 64, 64
          %282 = vsyncadd %s276, %s281
          %s283 = smul.addr %s30, 64
          %s284 = scalar_lea.hbm %s2, %s283
          %s286 = sshll.u32 %s279, 4
          %s287 = int_to_ptr.vmem [resolvable:$true] %s286
          %289 = dma.hbm_to_vmem [thread:$0]  %s284, 64, %s287, %s276
        $region32: #{tpu_custom_call.1} parent=23 // pred_fallthru
          _
        // Predicated region
        $region33: #{tpu_custom_call.1} parent=23 // pred_check
          %p290 = pneg %p129
        $region34: #{tpu_custom_call.1} parent=23 // pred_check_branch
          %292 = sbr.rel (%p290) target = $region36
        $region35: #{tpu_custom_call.1} parent=23 // pred_region
          %s293 = sand.u32 %s119, 1
          %s294 = scalar_lea.sflag [#allocation10], %s293
          %s295 = sand.u32 %s119, 1
          %s296 = smul.addr %s295, 256
          %s297 = scalar_lea.vmem [#allocation9], %s296
          %s298 = smul.u32 16, %s30
          %s299 = smul.u32 2, %s29
          %s301 = ssub.s32 4096, 4096
          %302 = vsyncadd %s294, %s301
          %s303 = smul.addr %s298, 2
          %s304 = sadd.s32 %s299, %s303
          %s305 = smul.addr %s304, 128
          %s306 = scalar_lea.hbm %s3, %s305
          %s307 = sshll.u32 %s297, 4
          %s308 = int_to_ptr.vmem [resolvable:$true] %s307
          %313 = dma.hbm_to_vmem [thread:$0]  %s306, 4096, %s308, %s294, 256, 256, 16
        $region36: #{tpu_custom_call.1} parent=23 // pred_fallthru
          _
      $region24: #{tpu_custom_call.1} parent=5 // pred_fallthru
        _
      %p314 = scmp.le.s32.totalorder 1, %s22
      %p315 = scmp.lt.s32.totalorder %s22, 3
      %p316 = pnand %p314, %p315
      %p317 = pneg %p316
      // Predicated region
      $region37: #{tpu_custom_call.1} parent=5 // pred_check
        _
      $region38: #{tpu_custom_call.1} parent=5 // pred_check_branch
        %319 = sbr.rel (%p316) target = $region40
      $region39: #{tpu_custom_call.1} parent=5 // pred_region
        %s320 = ssub.s32 %s22, 1
        // Predicated region
        $region41: #{tpu_custom_call.1} parent=39 // pred_check
          %p321 = pneg %p55
        $region42: #{tpu_custom_call.1} parent=39 // pred_check_branch
          %323 = sbr.rel (%p321) target = $region44
        $region43: #{tpu_custom_call.1} parent=39 // pred_region
          %324 = dma.done [#allocation4], 256
        $region44: #{tpu_custom_call.1} parent=39 // pred_fallthru
          _
        %s325 = sand.u32 %s27, 1
        %s326 = scalar_lea.sflag [#allocation7], %s325
        %s327 = sand.u32 %s68, 1
        %s328 = smul.addr %s327, 256
        %s329 = scalar_lea.vmem [#allocation6], %s328
        // Predicated region
        $region45: #{tpu_custom_call.1} parent=39 // pred_check
          %p330 = pneg %p81
        $region46: #{tpu_custom_call.1} parent=39 // pred_check_branch
          %332 = sbr.rel (%p330) target = $region48
        $region47: #{tpu_custom_call.1} parent=39 // pred_region
          %333 = dma.done %s326, 4096
        $region48: #{tpu_custom_call.1} parent=39 // pred_fallthru
          _
        %s334 = sand.u32 %s27, 1
        %s335 = scalar_lea.sflag [#allocation7], %s334
        %s336 = sand.u32 %s94, 1
        %s337 = smul.addr %s336, 4
        %s338 = scalar_lea.vmem [#allocation8], %s337
        // Predicated region
        $region49: #{tpu_custom_call.1} parent=39 // pred_check
          %p339 = pneg %p107
        $region50: #{tpu_custom_call.1} parent=39 // pred_check_branch
          %341 = sbr.rel (%p339) target = $region52
        $region51: #{tpu_custom_call.1} parent=39 // pred_region
          %342 = dma.done %s335, 64
        $region52: #{tpu_custom_call.1} parent=39 // pred_fallthru
          _
        %s343 = sand.u32 %s122, 1
        %s344 = scalar_lea.sflag [#allocation10], %s343
        %s345 = sand.u32 %s122, 1
        %s346 = smul.addr %s345, 256
        %s347 = scalar_lea.vmem [#allocation9], %s346
        // Predicated region
        $region53: #{tpu_custom_call.1} parent=39 // pred_check
          %p348 = pneg %p135
        $region54: #{tpu_custom_call.1} parent=39 // pred_check_branch
          %350 = sbr.rel (%p348) target = $region56
        $region55: #{tpu_custom_call.1} parent=39 // pred_region
          %351 = dma.done %s344, 4096
        $region56: #{tpu_custom_call.1} parent=39 // pred_fallthru
          _
        %p352 = pneg %p55
        %p353 = pneg %p52
        %s354 = sand.u32 %s27, 1
        %s355 = scalar_lea.sflag [#allocation7], %s354
        %s356 = sand.u32 %s68, 1
        %s357 = smul.addr %s356, 256
        %s358 = scalar_lea.vmem [#allocation6], %s357
        %p359 = pneg %p81
        %p360 = pneg %p78
        %s361 = sand.u32 %s27, 1
        %s362 = scalar_lea.sflag [#allocation7], %s361
        %s363 = sand.u32 %s94, 1
        %s364 = smul.addr %s363, 4
        %s365 = scalar_lea.vmem [#allocation8], %s364
        %p366 = pneg %p107
        %p367 = pneg %p104
        %s368 = sand.u32 %s122, 1
        %s369 = scalar_lea.sflag [#allocation10], %s368
        %s370 = sand.u32 %s122, 1
        %s371 = smul.addr %s370, 256
        %s372 = scalar_lea.vmem [#allocation9], %s371
        %p373 = pneg %p135
        %p374 = pneg %p132
        %s375 = smul.u32 2, %s31
        %p376 = scmp.lt.s32.totalorder %s375, 1
        %s377 = scalar_select %p376, %s375, 1
        %s378 = scalar_lea.vmem %s4, %s377
        %p379 = pneg %p161
        %p380 = pneg %p158
        %p381 = pneg %p187
        %p382 = pneg %p184
        %p383 = pneg %p213
        %p384 = pneg %p210
        %s385 = smul.u32 16, %s32
        %s386 = smul.u32 2, %s31
        %s387 = smul.u32 2, %s31
        %p388 = scmp.lt.s32.totalorder %s387, 1
        %s389 = scalar_select %p388, %s387, 1
        %s390 = scalar_lea.vmem %s4, %s389
        %s391 = smul.u32 2, %s31
        %s392 = smul.u32 2, %s31
        %s393 = smul.u32 2, %s31
        %p394 = scmp.eq.s32.totalorder %s32, 0
        // Predicated region
        $region57: #{tpu_custom_call.1} parent=39 // pred_check
          %p395 = pneg %p394
        $region58: #{tpu_custom_call.1} parent=39 // pred_check_branch
          %397 = sbr.rel (%p395) target = $region60
        $region59: #{tpu_custom_call.1} parent=39 // pred_region
          %v398 = vld [vmem:[#allocation3] sm:$0xff]
          %v399 = vld [vmem:[#allocation3 + $0x8] sm:$0xff]
          %400 = vst [vmem:[#allocation2] sm:$0xff] %v398
          %401 = vst [vmem:[#allocation2 + $0x8] sm:$0xff] %v399
          %402 = vst [vmem:[#allocation12] sm:$0xff] 0.0
          %403 = vst [vmem:[#allocation12 + $0x8] sm:$0xff] 0.0
        $region60: #{tpu_custom_call.1} parent=39 // pred_fallthru
          _
        %v404 = vld [vmem:[#allocation2] sm:$0xff]
        %v405 = vld [vmem:[#allocation2 + $0x8] sm:$0xff]
        %v406 = vld [vmem:[%s329] sm:$0xff]
        %v407 = vld [vmem:[%s329 + $0x8] sm:$0xff]
        %v408 = vld [vmem:[%s329 + $0x10] sm:$0xff]
        %v409 = vld [vmem:[%s329 + $0x18] sm:$0xff]
        %v410 = vld [vmem:[%s329 + $0x20] sm:$0xff]
        %v411 = vld [vmem:[%s329 + $0x28] sm:$0xff]
        %v412 = vld [vmem:[%s329 + $0x30] sm:$0xff]
        %v413 = vld [vmem:[%s329 + $0x38] sm:$0xff]
        %v414 = vld [vmem:[%s329 + $0x40] sm:$0xff]
        %v415 = vld [vmem:[%s329 + $0x48] sm:$0xff]
        %v416 = vld [vmem:[%s329 + $0x50] sm:$0xff]
        %v417 = vld [vmem:[%s329 + $0x58] sm:$0xff]
        %v418 = vld [vmem:[%s329 + $0x60] sm:$0xff]
        %v419 = vld [vmem:[%s329 + $0x68] sm:$0xff]
        %v420 = vld [vmem:[%s329 + $0x70] sm:$0xff]
        %v421 = vld [vmem:[%s329 + $0x78] sm:$0xff]
        %v422 = vld [vmem:[%s329 + $0x80] sm:$0xff]
        %v423 = vld [vmem:[%s329 + $0x88] sm:$0xff]
        %v424 = vld [vmem:[%s329 + $0x90] sm:$0xff]
        %v425 = vld [vmem:[%s329 + $0x98] sm:$0xff]
        %v426 = vld [vmem:[%s329 + $0xa0] sm:$0xff]
        %v427 = vld [vmem:[%s329 + $0xa8] sm:$0xff]
        %v428 = vld [vmem:[%s329 + $0xb0] sm:$0xff]
        %v429 = vld [vmem:[%s329 + $0xb8] sm:$0xff]
        %v430 = vld [vmem:[%s329 + $0xc0] sm:$0xff]
        %v431 = vld [vmem:[%s329 + $0xc8] sm:$0xff]
        %v432 = vld [vmem:[%s329 + $0xd0] sm:$0xff]
        %v433 = vld [vmem:[%s329 + $0xd8] sm:$0xff]
        %v434 = vld [vmem:[%s329 + $0xe0] sm:$0xff]
        %v435 = vld [vmem:[%s329 + $0xe8] sm:$0xff]
        %v436 = vld [vmem:[%s329 + $0xf0] sm:$0xff]
        %v437 = vld [vmem:[%s329 + $0xf8] sm:$0xff]
        %v438 = vld [vmem:[%s338] sm:$0x1]
        %v439 = vlaneseq
        %v440 = vshrl.u32 %v439, 7
        %v441 = vsub.s32 0, %v440
        %v442 = vrot.slane %v438, %v441
        %443 = vmatprep.subr.mxu0 0.0
        %444 = vmatpush1.msra.mxu0 %v406
        %445 = vmatprep.subr.mxu0 0.0
        %446 = vmatpush1.msra.mxu0 %v407
        %447 = vmatprep.subr.mxu0 0.0
        %448 = vmatpush1.msra.mxu0 %v408
        %449 = vmatprep.subr.mxu0 0.0
        %450 = vmatpush1.msra.mxu0 %v409
        %451 = vmatprep.subr.mxu0 0.0
        %452 = vmatpush1.msra.mxu0 %v410
        %453 = vmatprep.subr.mxu0 0.0
        %454 = vmatpush1.msra.mxu0 %v411
        %455 = vmatprep.subr.mxu0 0.0
        %456 = vmatpush1.msra.mxu0 %v412
        %457 = vmatprep.subr.mxu0 0.0
        %458 = vmatpush1.msra.mxu0 %v413
        %459 = vmatprep.subr.mxu0 0.0
        %460 = vmatpush1.msra.mxu0 %v414
        %461 = vmatprep.subr.mxu0 0.0
        %462 = vmatpush1.msra.mxu0 %v415
        %463 = vmatprep.subr.mxu0 0.0
        %464 = vmatpush1.msra.mxu0 %v416
        %465 = vmatprep.subr.mxu0 0.0
        %466 = vmatpush1.msra.mxu0 %v417
        %467 = vmatprep.subr.mxu0 0.0
        %468 = vmatpush1.msra.mxu0 %v418
        %469 = vmatprep.subr.mxu0 0.0
        %470 = vmatpush1.msra.mxu0 %v419
        %471 = vmatprep.subr.mxu0 0.0
        %472 = vmatpush1.msra.mxu0 %v420
        %473 = vmatprep.subr.mxu0 0.0
        %474 = vmatpush1.msra.mxu0 %v421
        %475 = vmatprep.subr.mxu0 0.0
        %476 = vmatpush1.msra.mxu0 %v422
        %477 = vmatprep.subr.mxu0 0.0
        %478 = vmatpush1.msra.mxu0 %v423
        %479 = vmatprep.subr.mxu0 0.0
        %480 = vmatpush1.msra.mxu0 %v424
        %481 = vmatprep.subr.mxu0 0.0
        %482 = vmatpush1.msra.mxu0 %v425
        %483 = vmatprep.subr.mxu0 0.0
        %484 = vmatpush1.msra.mxu0 %v426
        %485 = vmatprep.subr.mxu0 0.0
        %486 = vmatpush1.msra.mxu0 %v427
        %487 = vmatprep.subr.mxu0 0.0
        %488 = vmatpush1.msra.mxu0 %v428
        %489 = vmatprep.subr.mxu0 0.0
        %490 = vmatpush1.msra.mxu0 %v429
        %491 = vmatprep.subr.mxu0 0.0
        %492 = vmatpush1.msra.mxu0 %v430
        %493 = vmatprep.subr.mxu0 0.0
        %494 = vmatpush1.msra.mxu0 %v431
        %495 = vmatprep.subr.mxu0 0.0
        %496 = vmatpush1.msra.mxu0 %v432
        %497 = vmatprep.subr.mxu0 0.0
        %498 = vmatpush1.msra.mxu0 %v433
        %499 = vmatprep.subr.mxu0 0.0
        %500 = vmatpush1.msra.mxu0 %v434
        %501 = vmatprep.subr.mxu0 0.0
        %502 = vmatpush1.msra.mxu0 %v435
        %503 = vmatprep.subr.mxu0 0.0
        %504 = vmatpush1.msra.mxu0 %v436
        %505 = vmatprep.subr.mxu0 0.0
        %506 = vmatpush1.msra.mxu0 %v437
        %507 = vmatprep.mubr.f32.mxu0 %v405
        %508 = vmatmul.mubr.f32.gmra.mrb[0].mxu0 %v404
        %v509 = vpop.f32.mrb[0].mxu0
        %v510 = vadd.f32 %v442, %v509
        %v511 = vpop.f32.mrb[0].mxu0
        %512 = vdwg.mxu0
        %v513 = vrot.slane %v510, 4
        %v514 = vadd.f32 %v510, %v513
        %v515 = vrot.slane %v514, 2
        %v516 = vadd.f32 %v514, %v515
        %v517 = vrot.slane %v516, 1
        %v518 = vadd.f32 %v516, %v517
        %v519 = vrcp.pop 8.0
        %v520 = vmul.f32 %v518, %v519
        %v521 = vsub.f32 %v510, %v520
        %v522 = vmul.f32 %v521, %v521
        %v523 = vrot.slane %v522, 4
        %v524 = vadd.f32 %v522, %v523
        %v525 = vrot.slane %v524, 2
        %v526 = vadd.f32 %v524, %v525
        %v527 = vrot.slane %v526, 1
        %v528 = vadd.f32 %v526, %v527
        %v529 = vmul.f32 %v528, %v519
        %v530 = vadd.f32 %v529, 1e-05
        %v531 = vrsqrt.pop %v530
        %v532 = vld [vmem:[%s338 + $0x1] sm:$0x1]
        %v533 = vmul.f32 %v531, %v532
        %v534 = vlaneseq
        %v535 = vshrl.u32 %v534, 7
        %v536 = vsub.s32 0, %v535
        %v537 = vrot.slane %v533, %v536
        %v538 = vmul.f32 %v521, %v537
        %v539 = vld [vmem:[%s338 + $0x2] sm:$0x1]
        %v540 = vlaneseq
        %v541 = vshrl.u32 %v540, 7
        %v542 = vsub.s32 0, %v541
        %v543 = vrot.slane %v539, %v542
        %v544 = vadd.f32 %v538, %v543
        %v545 = vmax.f32 %v544, 0.0
        %v546 = vld [vmem:[#allocation12] sm:$0xff]
        %v547 = vld [vmem:[#allocation12 + $0x8] sm:$0xff]
        %v548 = vld [vmem:[%s347] sm:$0xff]
        %v549 = vld [vmem:[%s347 + $0x8] sm:$0xff]
        %v550 = vld [vmem:[%s347 + $0x10] sm:$0xff]
        %v551 = vld [vmem:[%s347 + $0x18] sm:$0xff]
        %v552 = vld [vmem:[%s347 + $0x20] sm:$0xff]
        %v553 = vld [vmem:[%s347 + $0x28] sm:$0xff]
        %v554 = vld [vmem:[%s347 + $0x30] sm:$0xff]
        %v555 = vld [vmem:[%s347 + $0x38] sm:$0xff]
        %v556 = vld [vmem:[%s347 + $0x40] sm:$0xff]
        %v557 = vld [vmem:[%s347 + $0x48] sm:$0xff]
        %v558 = vld [vmem:[%s347 + $0x50] sm:$0xff]
        %v559 = vld [vmem:[%s347 + $0x58] sm:$0xff]
        %v560 = vld [vmem:[%s347 + $0x60] sm:$0xff]
        %v561 = vld [vmem:[%s347 + $0x68] sm:$0xff]
        %v562 = vld [vmem:[%s347 + $0x70] sm:$0xff]
        %v563 = vld [vmem:[%s347 + $0x78] sm:$0xff]
        %v564 = vld [vmem:[%s347 + $0x80] sm:$0xff]
        %v565 = vld [vmem:[%s347 + $0x88] sm:$0xff]
        %v566 = vld [vmem:[%s347 + $0x90] sm:$0xff]
        %v567 = vld [vmem:[%s347 + $0x98] sm:$0xff]
        %v568 = vld [vmem:[%s347 + $0xa0] sm:$0xff]
        %v569 = vld [vmem:[%s347 + $0xa8] sm:$0xff]
        %v570 = vld [vmem:[%s347 + $0xb0] sm:$0xff]
        %v571 = vld [vmem:[%s347 + $0xb8] sm:$0xff]
        %v572 = vld [vmem:[%s347 + $0xc0] sm:$0xff]
        %v573 = vld [vmem:[%s347 + $0xc8] sm:$0xff]
        %v574 = vld [vmem:[%s347 + $0xd0] sm:$0xff]
        %v575 = vld [vmem:[%s347 + $0xd8] sm:$0xff]
        %v576 = vld [vmem:[%s347 + $0xe0] sm:$0xff]
        %v577 = vld [vmem:[%s347 + $0xe8] sm:$0xff]
        %v578 = vld [vmem:[%s347 + $0xf0] sm:$0xff]
        %v579 = vld [vmem:[%s347 + $0xf8] sm:$0xff]
        %580 = vmatprep.subr.mxu0 %v549
        %581 = vmatpush1.msra.mxu0 %v548
        %582 = vmatprep.subr.mxu0 %v551
        %583 = vmatpush1.msra.mxu0 %v550
        %584 = vmatprep.subr.mxu0 %v553
        %585 = vmatpush1.msra.mxu0 %v552
        %586 = vmatprep.subr.mxu0 %v555
        %587 = vmatpush1.msra.mxu0 %v554
        %588 = vmatprep.subr.mxu0 %v557
        %589 = vmatpush1.msra.mxu0 %v556
        %590 = vmatprep.subr.mxu0 %v559
        %591 = vmatpush1.msra.mxu0 %v558
        %592 = vmatprep.subr.mxu0 %v561
        %593 = vmatpush1.msra.mxu0 %v560
        %594 = vmatprep.subr.mxu0 %v563
        %595 = vmatpush1.msra.mxu0 %v562
        %596 = vmatprep.subr.mxu0 %v565
        %597 = vmatpush1.msra.mxu0 %v564
        %598 = vmatprep.subr.mxu0 %v567
        %599 = vmatpush1.msra.mxu0 %v566
        %600 = vmatprep.subr.mxu0 %v569
        %601 = vmatpush1.msra.mxu0 %v568
        %602 = vmatprep.subr.mxu0 %v571
        %603 = vmatpush1.msra.mxu0 %v570
        %604 = vmatprep.subr.mxu0 %v573
        %605 = vmatpush1.msra.mxu0 %v572
        %606 = vmatprep.subr.mxu0 %v575
        %607 = vmatpush1.msra.mxu0 %v574
        %608 = vmatprep.subr.mxu0 %v577
        %609 = vmatpush1.msra.mxu0 %v576
        %610 = vmatprep.subr.mxu0 %v579
        %611 = vmatpush1.msra.mxu0 %v578
        %612 = vmatprep.subr.mxu0 0.0
        %613 = vmatpush1.msra.mxu0 0.0
        %614 = vmatprep.subr.mxu0 0.0
        %615 = vmatpush1.msra.mxu0 0.0
        %616 = vmatprep.subr.mxu0 0.0
        %617 = vmatpush1.msra.mxu0 0.0
        %618 = vmatprep.subr.mxu0 0.0
        %619 = vmatpush1.msra.mxu0 0.0
        %620 = vmatprep.subr.mxu0 0.0
        %621 = vmatpush1.msra.mxu0 0.0
        %622 = vmatprep.subr.mxu0 0.0
        %623 = vmatpush1.msra.mxu0 0.0
        %624 = vmatprep.subr.mxu0 0.0
        %625 = vmatpush1.msra.mxu0 0.0
        %626 = vmatprep.subr.mxu0 0.0
        %627 = vmatpush1.msra.mxu0 0.0
        %628 = vmatprep.subr.mxu0 0.0
        %629 = vmatpush1.msra.mxu0 0.0
        %630 = vmatprep.subr.mxu0 0.0
        %631 = vmatpush1.msra.mxu0 0.0
        %632 = vmatprep.subr.mxu0 0.0
        %633 = vmatpush1.msra.mxu0 0.0
        %634 = vmatprep.subr.mxu0 0.0
        %635 = vmatpush1.msra.mxu0 0.0
        %636 = vmatprep.subr.mxu0 0.0
        %637 = vmatpush1.msra.mxu0 0.0
        %638 = vmatprep.subr.mxu0 0.0
        %639 = vmatpush1.msra.mxu0 0.0
        %640 = vmatprep.subr.mxu0 0.0
        %641 = vmatpush1.msra.mxu0 0.0
        %642 = vmatprep.subr.mxu0 0.0
        %643 = vmatpush1.msra.mxu0 0.0
        %644 = vmatprep.mubr.f32.mxu0 0.0
        %645 = vmatmul.mubr.f32.gmra.mrb[0].mxu0 %v545
        %v646 = vpop.f32.mrb[0].mxu0
        %v647 = vadd.f32 0.0, %v646
        %v648 = vpop.f32.mrb[0].mxu0
        %v649 = vadd.f32 0.0, %v648
        %650 = vdwg.mxu0
        %v651 = vadd.f32 %v546, %v647
        %v652 = vadd.f32 %v547, %v649
        %653 = vst [vmem:[#allocation12] sm:$0xff] %v651
        %654 = vst [vmem:[#allocation12 + $0x8] sm:$0xff] %v652
        %p655 = scmp.eq.s32.totalorder %s32, 1
        // Predicated region
        $region61: #{tpu_custom_call.1} parent=39 // pred_check
          %p656 = pneg %p655
        $region62: #{tpu_custom_call.1} parent=39 // pred_check_branch
          %658 = sbr.rel (%p656) target = $region64
        $region63: #{tpu_custom_call.1} parent=39 // pred_region
          %v659 = vld [vmem:[#allocation12] sm:$0xff]
          %v660 = vld [vmem:[#allocation12 + $0x8] sm:$0xff]
          %v661 = vld [vmem:[%s390] sm:$0x3]
          %v663 = vlaneseq
          %v664 = vshrl.u32 %v663, 7
          %v665 = vsub.s32 0, %v664
          %v666 = vrot.slane %v661, %v665
          %v667 = vlaneseq
          %v668 = vshrl.u32 %v667, 7
          %v669 = vsub.s32 1, %v668
          %v670 = vrot.slane %v661, %v669
          %v673 = vadd.f32 %v659, %v666
          %v674 = vadd.f32 %v660, %v670
          %675 = vst [vmem:[#allocation12] sm:$0xff] %v673
          %676 = vst [vmem:[#allocation12 + $0x8] sm:$0xff] %v674
          %s677 = smul.u32 %s31, 256
          %s678 = sshra.s32 %s677, 7
          %s679 = sand.u32 %s677, 127
          %s680 = smul.addr %s678, 8
          %s681 = scalar_lea.vmem [#allocation3], %s680
          %v682 = vld [vmem:[%s681] sm:$0xff]
          %v683 = vld [vmem:[%s681 + $0x8] sm:$0xff]
          %v684 = vld [vmem:[#allocation12] sm:$0xff]
          %v685 = vld [vmem:[#allocation12 + $0x8] sm:$0xff]
          %v686 = vadd.f32 %v682, %v684
          %v687 = vadd.f32 %v683, %v685
          %688 = vst [vmem:[#allocation11] sm:$0xff] %v686
          %689 = vst [vmem:[#allocation11 + $0x8] sm:$0xff] %v687
        $region64: #{tpu_custom_call.1} parent=39 // pred_fallthru
          _
        // Predicated region
        $region65: #{tpu_custom_call.1} parent=39 // pred_check
          %p690 = pneg %p184
        $region66: #{tpu_custom_call.1} parent=39 // pred_check_branch
          %692 = sbr.rel (%p690) target = $region68
        $region67: #{tpu_custom_call.1} parent=39 // pred_region
          %s693 = smul.u32 2, %s31
          %s695 = ssub.s32 256, 256
          %696 = vsyncadd [#allocation5], %s695
          %s697 = smul.addr %s693, 128
          %s698 = scalar_lea.hbm %s5, %s697
          %s700 = sshll.u32 [#allocation11], 4
          %s701 = int_to_ptr.vmem [resolvable:$true] %s700
          %703 = dma.vmem_to_hbm [thread:$0]  %s701, 256, %s698, [#allocation5]
        $region68: #{tpu_custom_call.1} parent=39 // pred_fallthru
          _
        // Predicated region
        $region69: #{tpu_custom_call.1} parent=39 // pred_check
          %p704 = pneg %p210
        $region70: #{tpu_custom_call.1} parent=39 // pred_check_branch
          %706 = sbr.rel (%p704) target = $region72
        $region71: #{tpu_custom_call.1} parent=39 // pred_region
          %s707 = smul.u32 2, %s31
          %s709 = ssub.s32 256, 256
          %710 = vsyncadd [#allocation13], %s709
          %s711 = smul.addr %s707, 128
          %s712 = scalar_lea.hbm %s6, %s711
          %s714 = sshll.u32 [#allocation12], 4
          %s715 = int_to_ptr.vmem [resolvable:$true] %s714
          %717 = dma.vmem_to_hbm [thread:$0]  %s715, 256, %s712, [#allocation13]
        $region72: #{tpu_custom_call.1} parent=39 // pred_fallthru
          _
        // Predicated region
        $region73: #{tpu_custom_call.1} parent=39 // pred_check
          %p718 = pneg %p184
        $region74: #{tpu_custom_call.1} parent=39 // pred_check_branch
          %720 = sbr.rel (%p718) target = $region76
        $region75: #{tpu_custom_call.1} parent=39 // pred_region
          %721 = dma.done [#allocation5], 256
        $region76: #{tpu_custom_call.1} parent=39 // pred_fallthru
          _
        // Predicated region
        $region77: #{tpu_custom_call.1} parent=39 // pred_check
          %p722 = pneg %p210
        $region78: #{tpu_custom_call.1} parent=39 // pred_check_branch
          %724 = sbr.rel (%p722) target = $region80
        $region79: #{tpu_custom_call.1} parent=39 // pred_region
          %725 = dma.done [#allocation13], 256
        $region80: #{tpu_custom_call.1} parent=39 // pred_fallthru
          _
      $region40: #{tpu_custom_call.1} parent=5 // pred_fallthru
        _
      %p726 = scmp.le.s32.totalorder 2, %s22
      // Predicated region
      $region81: #{tpu_custom_call.1} parent=5 // pred_check
        %p727 = pneg %p726
      $region82: #{tpu_custom_call.1} parent=5 // pred_check_branch
        %729 = sbr.rel (%p727) target = $region84
      $region83: #{tpu_custom_call.1} parent=5 // pred_region
        %s730 = ssub.s32 %s22, 2
      $region84: #{tpu_custom_call.1} parent=5 // pred_fallthru
        _
    $region6: #{tpu_custom_call.1} parent=1 // loop_footer
      %s26 = sadd.s32 1, %s22
    $region7: #{tpu_custom_call.1} parent=1 // loop_footer_branch
      %21 = sbr.rel target = $region3
    $region8: #{tpu_custom_call.1} parent=1 // loop_exit
      _
    %731 = vsyncpa [#allocation4], 1
    %s732 = scalar_lea.sflag [#allocation4], 1
    %733 = vsyncpa %s732, 1
    %734 = vsyncpa [#allocation7], 1
    %s735 = scalar_lea.sflag [#allocation7], 1
    %736 = vsyncpa %s735, 1
    %737 = vsyncpa [#allocation10], 1
    %s738 = scalar_lea.sflag [#allocation10], 1
    %739 = vsyncpa %s738, 1
    %740 = vsyncpa [#allocation5], 1
    %s741 = scalar_lea.sflag [#allocation5], 1
    %742 = vsyncpa %s741, 1
    %743 = vsyncpa [#allocation13], 1

</llo_original>
